<compile_context>
chip_gen: v6e
topology: v6e:2x2x1
jax: 0.10.0
libtpu: 0.0.40
codegen_flags: <defaults>
</compile_context>

<pallas_src>
import functools

import jax
import jax.numpy as jnp
from jax import lax
from jax.experimental import pallas as pl
from jax.experimental.pallas import tpu as pltpu


def convgru_cell_kernel(cols_xh_ref, w_all_ref, wch_ref, o_ref,
                        rh_ref, cols_rh_ref, *,
                        K, Wp, off0, Ntot, Ch, Ch_p, Cin_p, Lb):
    """Single invocation, all batches folded onto the lane axis.

    cols_xh_ref : (K*K*(Cin_p+Ch_p)+1, Ntot)  precomputed im2col of [x; h] + ones row
    w_all_ref   : (3*Ch, K*K*(Cin_p+Ch_p)+1)  gate conv + x-half of candidate conv
                                              (+ bias column, matched to ones row)
    wch_ref     : (Ch, K*K*Ch_p)              h-half of candidate conv
    o_ref       : (Ch, Ntot)                  next hidden state, wide stacked layout
    rh_ref      : (Ch_p, Lb)     VMEM scratch: padded flat image of reset_gate*h
    cols_rh_ref : (K*K*Ch_p, Ntot) VMEM scratch: im2col of reset_gate*h
    """
    # One fused MXU matmul: gates (first 2*Ch rows) + conv_can(x) (last Ch rows).
    # Biases already folded in via the constant-1 row of cols_xh.
    top = jnp.dot(w_all_ref[...], cols_xh_ref[...],
                  preferred_element_type=jnp.float32)       # (3*Ch, Ntot)

    reset_gate = jax.nn.sigmoid(top[:Ch, :])                 # gamma
    update_gate = jax.nn.sigmoid(top[Ch:2 * Ch, :])          # beta
    cand_x = top[2 * Ch:, :]                                 # conv_can x-part (+bc)

    # h (wide stacked layout) == center (dy=pad, dx=pad) block of cols_h inside
    # cols_xh -> no extra unaligned lane slice needed.  Garbage columns are 0
    # there (they read h's spatial padding), so reset_gate*h stays 0 in them.
    pad_k = K // 2
    h_row0 = K * K * Cin_p + (pad_k * K + pad_k) * Ch_p      # 8-aligned
    h_in = cols_xh_ref[h_row0:h_row0 + Ch, :]                # (Ch, Ntot)

    rh = reset_gate * h_in                                   # (Ch, Ntot)

    # Scatter rh into the zero-padded flat image used by the candidate conv.
    # Only the halo needs zeroing; the interior is fully overwritten.
    if off0 > 0:
        rh_ref[:, :off0] = jnp.zeros((Ch_p, off0), jnp.float32)
    if Lb > off0 + Ntot:
        rh_ref[:, off0 + Ntot:] = jnp.zeros((Ch_p, Lb - off0 - Ntot),
                                            jnp.float32)
    if Ch_p > Ch:
        rh_ref[Ch:, off0:off0 + Ntot] = jnp.zeros((Ch_p - Ch, Ntot),
                                                  jnp.float32)
    rh_ref[:Ch, off0:off0 + Ntot] = rh

    # im2col of rh: each kernel offset is a contiguous lane slice of the padded
    # flat image; write pieces directly into the cols scratch at 8-aligned row
    # offsets (no concatenate temporary).
    for p in range(K * K):
        dy, dx = p // K, p % K
        o = dy * Wp + dx
        cols_rh_ref[p * Ch_p:(p + 1) * Ch_p, :] = rh_ref[:, o:o + Ntot]

    cand = jnp.tanh(cand_x + jnp.dot(wch_ref[...], cols_rh_ref[...],
                                     preferred_element_type=jnp.float32))

    h_next = h_in + update_gate * (cand - h_in)              # (1-u)*h + u*cand
    o_ref[...] = h_next.astype(o_ref.dtype)


def convgru_cell(x_nchw, h_nchw, wg_oihw, bg, wc_oihw, bc, kernel_size):
    """ConvGRUCell forward. PyTorch layouts: x/h NCHW, weights OIHW.

    Returns h_next as (B, Ch, H, W) float32 (NCHW, same as the PyTorch module).
    """
    B, Cin, H, W = x_nchw.shape
    Ch = h_nchw.shape[1]
    K = kernel_size
    pad = K // 2
    Hp, Wp = H + 2 * pad, W + 2 * pad
    SUB = 8
    Cin_p = -(-Cin // SUB) * SUB                 # channel pad -> sublane multiple
    Ch_p = -(-Ch // SUB) * SUB
    f32 = jnp.float32

    off0 = pad * Wp + pad                        # flat offset of output pixel (0,0,0)
    max_off = (K - 1) * Wp + (K - 1)             # largest im2col slice start
    n_valid = B * Hp * Wp - 2 * pad * Wp         # last valid wide column + 1
    Ntot = -(-n_valid // 128) * 128              # lane-pad N to a multiple of 128
    Lb = -(-(max_off + Ntot) // 128) * 128       # padded flat-image lane length
    Lb = max(Lb, off0 + Ntot)

    def flat_stack(t, Cp):
        # (B, C, H, W) -> (Cp, Lb): zero 'same' spatial pad, channel pad to the
        # sublane multiple, stack batches vertically (B*Hp rows), row-major
        # flatten at width Wp, zero halo at the end.
        tp = jnp.pad(t.astype(f32),
                     ((0, 0), (0, Cp - t.shape[1]), (pad, pad), (pad, pad)))
        tp = jnp.transpose(tp, (1, 0, 2, 3)).reshape(Cp, B * Hp * Wp)
        return jnp.pad(tp, ((0, 0), (0, Lb - B * Hp * Wp)))

    x_flat = flat_stack(x_nchw, Cin_p)           # (Cin_p, Lb)
    h_flat = flat_stack(h_nchw, Ch_p)            # (Ch_p,  Lb)

    # Static (reset-gate-independent) im2col hoisted out of the kernel.
    offs = [dy * Wp + dx for dy in range(K) for dx in range(K)]

    def im2col_host(flat):
        return jnp.concatenate([flat[:, o:o + Ntot] for o in offs], axis=0)

    cols_xh = jnp.concatenate(
        [im2col_host(x_flat),                    # (K*K*Cin_p, Ntot)
         im2col_host(h_flat),                    # (K*K*Ch_p,  Ntot)
         jnp.ones((1, Ntot), f32)],              # constant-1 row -> folded biases
        axis=0)
    Kdim1 = K * K * (Cin_p + Ch_p) + 1

    def w2d(w_part, Cp):
        # (O, Ig, K, K) -> (O, K*K*Cp); contraction index = (dy*K+dx)*Cp + cin.
        O, Ig = w_part.shape[:2]
        w = jnp.transpose(w_part.astype(f32), (0, 2, 3, 1))   # (O, K, K, Ig)
        w = jnp.pad(w, ((0, 0), (0, 0), (0, 0), (0, Cp - Ig)))
        return w.reshape(O, K * K * Cp)

    wg_x = w2d(wg_oihw[:, :Cin], Cin_p)          # (2*Ch, K*K*Cin_p)
    wg_h = w2d(wg_oihw[:, Cin:], Ch_p)           # (2*Ch, K*K*Ch_p)
    wc_x = w2d(wc_oihw[:, :Cin], Cin_p)          # (Ch,   K*K*Cin_p)
    wc_h = w2d(wc_oihw[:, Cin:], Ch_p)           # (Ch,   K*K*Ch_p)

    # Fused "top" weight: gate conv + x-half of candidate conv + bias column.
    w_all = jnp.concatenate([
        jnp.concatenate([wg_x, wg_h, bg.reshape(-1, 1).astype(f32)], axis=1),
        jnp.concatenate([wc_x, jnp.zeros((Ch, K * K * Ch_p), f32),
                         bc.reshape(-1, 1).astype(f32)], axis=1),
    ], axis=0)                                   # (3*Ch, Kdim1)

    kernel = functools.partial(
        convgru_cell_kernel, K=K, Wp=Wp, off0=off0, Ntot=Ntot,
        Ch=Ch, Ch_p=Ch_p, Cin_p=Cin_p, Lb=Lb)

    out_wide = pl.pallas_call(
        kernel,
        out_shape=jax.ShapeDtypeStruct((Ch, Ntot), f32),
        grid=(1,),
        in_specs=[
            pl.BlockSpec((Kdim1, Ntot), lambda i: (0, 0)),
            pl.BlockSpec((3 * Ch, Kdim1), lambda i: (0, 0)),
            pl.BlockSpec((Ch, K * K * Ch_p), lambda i: (0, 0)),
        ],
        out_specs=pl.BlockSpec((Ch, Ntot), lambda i: (0, 0)),
        scratch_shapes=[
            pltpu.VMEM((Ch_p, Lb), f32),             # padded flat reset_gate*h
            pltpu.VMEM((K * K * Ch_p, Ntot), f32),   # im2col of reset_gate*h
        ],
        compiler_params=pltpu.CompilerParams(
            dimension_semantics=("arbitrary",)),
    )(cols_xh, w_all, wc_h)

    # Unpack: batch b occupies wide columns [b*Hp*Wp, b*Hp*Wp + H*Wp); drop the
    # 2*pad garbage columns per row and the lane padding.
    parts = [out_wide[:, b * Hp * Wp: b * Hp * Wp + H * Wp]
             .reshape(Ch, H, Wp)[:, :, :W] for b in range(B)]
    return jnp.stack(parts, axis=0)              # (B, Ch, H, W)


def convgru_ref(x_nchw, h_nchw, wg_oihw, bg, wc_oihw, bc, hidden_dim):
    """Pure-JAX reference mirroring the PyTorch forward (NCHW / OIHW)."""
    dn = ("NCHW", "OIHW", "NCHW")
    combined = jnp.concatenate([x_nchw, h_nchw], axis=1)
    g = lax.conv_general_dilated(combined, wg_oihw, (1, 1), "SAME",
                                 dimension_numbers=dn) + bg.reshape(1, -1, 1, 1)
    reset_gate = jax.nn.sigmoid(g[:, :hidden_dim])
    update_gate = jax.nn.sigmoid(g[:, hidden_dim:])
    combined2 = jnp.concatenate([x_nchw, reset_gate * h_nchw], axis=1)
    cnm = jnp.tanh(lax.conv_general_dilated(combined2, wc_oihw, (1, 1), "SAME",
                                            dimension_numbers=dn)
                   + bc.reshape(1, -1, 1, 1))
    return (1.0 - update_gate) * h_nchw + update_gate * cnm


if __name__ == "__main__":
    # module hyperparameters (small, consistent with ConvGRUCell.__init__)
    B, Cin, H, W = 2, 4, 16, 16          # input_tensor: (b, c, h, w) NCHW
    hidden_dim = 8
    kernel_size = 3

    key = jax.random.PRNGKey(0)
    k1, k2, k3, k4, k5, k6 = jax.random.split(key, 6)

    x = jax.random.normal(k1, (B, Cin, H, W), jnp.float32)
    h = jax.random.normal(k2, (B, hidden_dim, H, W), jnp.float32)
    # conv_gates: Conv2d(Cin+Ch -> 2*Ch, k)   weight OIHW, bias (2*Ch,)
    wg = 0.1 * jax.random.normal(
        k3, (2 * hidden_dim, Cin + hidden_dim, kernel_size, kernel_size),
        jnp.float32)
    bg = 0.1 * jax.random.normal(k4, (2 * hidden_dim,), jnp.float32)
    # conv_can: Conv2d(Cin+Ch -> Ch, k)
    wc = 0.1 * jax.random.normal(
        k5, (hidden_dim, Cin + hidden_dim, kernel_size, kernel_size),
        jnp.float32)
    bc = 0.1 * jax.random.normal(k6, (hidden_dim,), jnp.float32)

    h_next = convgru_cell(x, h, wg, bg, wc, bc, kernel_size)
    h_next = jax.block_until_ready(h_next)

    h_ref = convgru_ref(x, h, wg, bg, wc, bc, hidden_dim)
    assert h_next.shape == (B, hidden_dim, H, W)
    err = float(jnp.max(jnp.abs(h_next - h_ref)))
    assert jnp.allclose(h_next, h_ref, rtol=1e-3, atol=1e-3), err

    print("KERNEL_OK")
</pallas_src>

<mosaic_0001>
module attributes {stable_mosaic.version = 11 : i64} {
  func.func @convgru_cell_kernel(%arg0: i32, %arg1: memref<145x640xf32, #tpu.memory_space<vmem>>, %arg2: memref<24x145xf32, #tpu.memory_space<vmem>>, %arg3: memref<8x72xf32, #tpu.memory_space<vmem>>, %arg4: memref<8x640xf32, #tpu.memory_space<vmem>>, %arg5: memref<8x768xf32, #tpu.memory_space<vmem>>, %arg6: memref<72x640xf32, #tpu.memory_space<vmem>>) attributes {dimension_semantics = [#tpu.dimension_semantics<arbitrary>], iteration_bounds = array<i64: 1>, scalar_prefetch = 0 : i64, scratch_operands = 2 : i64, tpu.core_type = #tpu.core_type<tc>, window_params = [{pipeline_mode = #tpu.pipeline_mode<synchronous>, transform_indices = @transform_0, window_bounds = array<i64: 145, 640>}, {pipeline_mode = #tpu.pipeline_mode<synchronous>, transform_indices = @transform_1, window_bounds = array<i64: 24, 145>}, {pipeline_mode = #tpu.pipeline_mode<synchronous>, transform_indices = @transform_2, window_bounds = array<i64: 8, 72>}, {pipeline_mode = #tpu.pipeline_mode<synchronous>, transform_indices = @transform_3, window_bounds = array<i64: 8, 640>}]} {
    %c0 = arith.constant 0 : index
    %c0_0 = arith.constant 0 : index
    %0 = vector.load %arg2[%c0, %c0_0] : memref<24x145xf32, #tpu.memory_space<vmem>>, vector<24x145xf32>
    %c0_1 = arith.constant 0 : index
    %c0_2 = arith.constant 0 : index
    %1 = vector.load %arg1[%c0_1, %c0_2] : memref<145x640xf32, #tpu.memory_space<vmem>>, vector<145x640xf32>
    %cst = arith.constant dense<0.000000e+00> : vector<24x640xf32>
    %2 = tpu.matmul %0, %1, %cst {dimension_numbers = #tpu.dot_dimension_numbers<[1], [0], [0], [1], [0, 0, 1, 1], [], []>} : vector<24x145xf32>, vector<145x640xf32>, vector<24x640xf32> -> vector<24x640xf32>
    %3 = vector.extract_strided_slice %2 {offsets = [0, 0], sizes = [8, 640], strides = [1, 1]} : vector<24x640xf32> to vector<8x640xf32>
    %4 = arith.negf %3 : vector<8x640xf32>
    %5 = math.exp %4 : vector<8x640xf32>
    %cst_3 = arith.constant 1.000000e+00 : f32
    %6 = vector.broadcast %cst_3 : f32 to vector<8x640xf32>
    %7 = arith.addf %6, %5 : vector<8x640xf32>
    %8 = arith.divf %6, %7 : vector<8x640xf32>
    %9 = vector.extract_strided_slice %2 {offsets = [8, 0], sizes = [8, 640], strides = [1, 1]} : vector<24x640xf32> to vector<8x640xf32>
    %10 = arith.negf %9 : vector<8x640xf32>
    %11 = math.exp %10 : vector<8x640xf32>
    %cst_4 = arith.constant 1.000000e+00 : f32
    %12 = vector.broadcast %cst_4 : f32 to vector<8x640xf32>
    %13 = arith.addf %12, %11 : vector<8x640xf32>
    %14 = arith.divf %12, %13 : vector<8x640xf32>
    %15 = vector.extract_strided_slice %2 {offsets = [16, 0], sizes = [8, 640], strides = [1, 1]} : vector<24x640xf32> to vector<8x640xf32>
    %c104 = arith.constant 104 : index
    %c0_5 = arith.constant 0 : index
    %16 = vector.load %arg1[%c104, %c0_5] : memref<145x640xf32, #tpu.memory_space<vmem>>, vector<8x640xf32>
    %17 = arith.mulf %8, %16 : vector<8x640xf32>
    %cst_6 = arith.constant 0.000000e+00 : f32
    %18 = vector.broadcast %cst_6 : f32 to vector<8x19xf32>
    %c0_7 = arith.constant 0 : index
    %c0_8 = arith.constant 0 : index
    %19 = vector.load %arg5[%c0_7, %c0_8] : memref<8x768xf32, #tpu.memory_space<vmem>>, vector<8x19xf32>
    tpu.vector_store %arg5[%c0_7, %c0_8], %18 {strides = array<i32>} : memref<8x768xf32, #tpu.memory_space<vmem>>, vector<8x19xf32>,
    %cst_9 = arith.constant 0.000000e+00 : f32
    %20 = vector.broadcast %cst_9 : f32 to vector<8x109xf32>
    %c0_10 = arith.constant 0 : index
    %c659 = arith.constant 659 : index
    %21 = vector.load %arg5[%c0_10, %c659] : memref<8x768xf32, #tpu.memory_space<vmem>>, vector<8x109xf32>
    tpu.vector_store %arg5[%c0_10, %c659], %20 {strides = array<i32>} : memref<8x768xf32, #tpu.memory_space<vmem>>, vector<8x109xf32>,
    %c0_11 = arith.constant 0 : index
    %c19 = arith.constant 19 : index
    %22 = vector.load %arg5[%c0_11, %c19] : memref<8x768xf32, #tpu.memory_space<vmem>>, vector<8x640xf32>
    tpu.vector_store %arg5[%c0_11, %c19], %17 {strides = array<i32>} : memref<8x768xf32, #tpu.memory_space<vmem>>, vector<8x640xf32>,
    %c0_12 = arith.constant 0 : index
    %c0_13 = arith.constant 0 : index
    %23 = vector.load %arg5[%c0_12, %c0_13] : memref<8x768xf32, #tpu.memory_space<vmem>>, vector<8x640xf32>
    %c0_14 = arith.constant 0 : index
    %c0_15 = arith.constant 0 : index
    %24 = vector.load %arg6[%c0_14, %c0_15] : memref<72x640xf32, #tpu.memory_space<vmem>>, vector<8x640xf32>
    tpu.vector_store %arg6[%c0_14, %c0_15], %23 {strides = array<i32>} : memref<72x640xf32, #tpu.memory_space<vmem>>, vector<8x640xf32>,
    %c0_16 = arith.constant 0 : index
    %c1 = arith.constant 1 : index
    %25 = vector.load %arg5[%c0_16, %c1] : memref<8x768xf32, #tpu.memory_space<vmem>>, vector<8x640xf32>
    %c8 = arith.constant 8 : index
    %c0_17 = arith.constant 0 : index
    %26 = vector.load %arg6[%c8, %c0_17] : memref<72x640xf32, #tpu.memory_space<vmem>>, vector<8x640xf32>
    tpu.vector_store %arg6[%c8, %c0_17], %25 {strides = array<i32>} : memref<72x640xf32, #tpu.memory_space<vmem>>, vector<8x640xf32>,
    %c0_18 = arith.constant 0 : index
    %c2 = arith.constant 2 : index
    %27 = vector.load %arg5[%c0_18, %c2] : memref<8x768xf32, #tpu.memory_space<vmem>>, vector<8x640xf32>
    %c16 = arith.constant 16 : index
    %c0_19 = arith.constant 0 : index
    %28 = vector.load %arg6[%c16, %c0_19] : memref<72x640xf32, #tpu.memory_space<vmem>>, vector<8x640xf32>
    tpu.vector_store %arg6[%c16, %c0_19], %27 {strides = array<i32>} : memref<72x640xf32, #tpu.memory_space<vmem>>, vector<8x640xf32>,
    %c0_20 = arith.constant 0 : index
    %c18 = arith.constant 18 : index
    %29 = vector.load %arg5[%c0_20, %c18] : memref<8x768xf32, #tpu.memory_space<vmem>>, vector<8x640xf32>
    %c24 = arith.constant 24 : index
    %c0_21 = arith.constant 0 : index
    %30 = vector.load %arg6[%c24, %c0_21] : memref<72x640xf32, #tpu.memory_space<vmem>>, vector<8x640xf32>
    tpu.vector_store %arg6[%c24, %c0_21], %29 {strides = array<i32>} : memref<72x640xf32, #tpu.memory_space<vmem>>, vector<8x640xf32>,
    %c0_22 = arith.constant 0 : index
    %c19_23 = arith.constant 19 : index
    %31 = vector.load %arg5[%c0_22, %c19_23] : memref<8x768xf32, #tpu.memory_space<vmem>>, vector<8x640xf32>
    %c32 = arith.constant 32 : index
    %c0_24 = arith.constant 0 : index
    %32 = vector.load %arg6[%c32, %c0_24] : memref<72x640xf32, #tpu.memory_space<vmem>>, vector<8x640xf32>
    tpu.vector_store %arg6[%c32, %c0_24], %31 {strides = array<i32>} : memref<72x640xf32, #tpu.memory_space<vmem>>, vector<8x640xf32>,
    %c0_25 = arith.constant 0 : index
    %c20 = arith.constant 20 : index
    %33 = vector.load %arg5[%c0_25, %c20] : memref<8x768xf32, #tpu.memory_space<vmem>>, vector<8x640xf32>
    %c40 = arith.constant 40 : index
    %c0_26 = arith.constant 0 : index
    %34 = vector.load %arg6[%c40, %c0_26] : memref<72x640xf32, #tpu.memory_space<vmem>>, vector<8x640xf32>
    tpu.vector_store %arg6[%c40, %c0_26], %33 {strides = array<i32>} : memref<72x640xf32, #tpu.memory_space<vmem>>, vector<8x640xf32>,
    %c0_27 = arith.constant 0 : index
    %c36 = arith.constant 36 : index
    %35 = vector.load %arg5[%c0_27, %c36] : memref<8x768xf32, #tpu.memory_space<vmem>>, vector<8x640xf32>
    %c48 = arith.constant 48 : index
    %c0_28 = arith.constant 0 : index
    %36 = vector.load %arg6[%c48, %c0_28] : memref<72x640xf32, #tpu.memory_space<vmem>>, vector<8x640xf32>
    tpu.vector_store %arg6[%c48, %c0_28], %35 {strides = array<i32>} : memref<72x640xf32, #tpu.memory_space<vmem>>, vector<8x640xf32>,
    %c0_29 = arith.constant 0 : index
    %c37 = arith.constant 37 : index
    %37 = vector.load %arg5[%c0_29, %c37] : memref<8x768xf32, #tpu.memory_space<vmem>>, vector<8x640xf32>
    %c56 = arith.constant 56 : index
    %c0_30 = arith.constant 0 : index
    %38 = vector.load %arg6[%c56, %c0_30] : memref<72x640xf32, #tpu.memory_space<vmem>>, vector<8x640xf32>
    tpu.vector_store %arg6[%c56, %c0_30], %37 {strides = array<i32>} : memref<72x640xf32, #tpu.memory_space<vmem>>, vector<8x640xf32>,
    %c0_31 = arith.constant 0 : index
    %c38 = arith.constant 38 : index
    %39 = vector.load %arg5[%c0_31, %c38] : memref<8x768xf32, #tpu.memory_space<vmem>>, vector<8x640xf32>
    %c64 = arith.constant 64 : index
    %c0_32 = arith.constant 0 : index
    %40 = vector.load %arg6[%c64, %c0_32] : memref<72x640xf32, #tpu.memory_space<vmem>>, vector<8x640xf32>
    tpu.vector_store %arg6[%c64, %c0_32], %39 {strides = array<i32>} : memref<72x640xf32, #tpu.memory_space<vmem>>, vector<8x640xf32>,
    %c0_33 = arith.constant 0 : index
    %c0_34 = arith.constant 0 : index
    %41 = vector.load %arg3[%c0_33, %c0_34] : memref<8x72xf32, #tpu.memory_space<vmem>>, vector<8x72xf32>
    %c0_35 = arith.constant 0 : index
    %c0_36 = arith.constant 0 : index
    %42 = vector.load %arg6[%c0_35, %c0_36] : memref<72x640xf32, #tpu.memory_space<vmem>>, vector<72x640xf32>
    %cst_37 = arith.constant dense<0.000000e+00> : vector<8x640xf32>
    %43 = tpu.matmul %41, %42, %cst_37 {dimension_numbers = #tpu.dot_dimension_numbers<[1], [0], [0], [1], [0, 0, 1, 1], [], []>} : vector<8x72xf32>, vector<72x640xf32>, vector<8x640xf32> -> vector<8x640xf32>
    %44 = arith.addf %15, %43 : vector<8x640xf32>
    %45 = math.tanh %44 : vector<8x640xf32>
    %46 = arith.subf %45, %16 : vector<8x640xf32>
    %47 = arith.mulf %14, %46 : vector<8x640xf32>
    %48 = arith.addf %16, %47 : vector<8x640xf32>
    %c0_38 = arith.constant 0 : index
    %c0_39 = arith.constant 0 : index
    %49 = vector.load %arg4[%c0_38, %c0_39] : memref<8x640xf32, #tpu.memory_space<vmem>>, vector<8x640xf32>
    tpu.vector_store %arg4[%c0_38, %c0_39], %48 {strides = array<i32>} : memref<8x640xf32, #tpu.memory_space<vmem>>, vector<8x640xf32>,
    return
  }
  func.func @transform_0(%arg0: i32) -> (i32, i32) {
    %c0_i32 = arith.constant 0 : i32
    %c0_i32_0 = arith.constant 0 : i32
    %c0_i32_1 = arith.constant 0 : i32
    return %c0_i32, %c0_i32_0 : i32, i32
  }
  func.func @transform_1(%arg0: i32) -> (i32, i32) {
    %c0_i32 = arith.constant 0 : i32
    %c0_i32_0 = arith.constant 0 : i32
    %c0_i32_1 = arith.constant 0 : i32
    return %c0_i32, %c0_i32_0 : i32, i32
  }
  func.func @transform_2(%arg0: i32) -> (i32, i32) {
    %c0_i32 = arith.constant 0 : i32
    %c0_i32_0 = arith.constant 0 : i32
    %c0_i32_1 = arith.constant 0 : i32
    return %c0_i32, %c0_i32_0 : i32, i32
  }
  func.func @transform_3(%arg0: i32) -> (i32, i32) {
    %c0_i32 = arith.constant 0 : i32
    %c0_i32_0 = arith.constant 0 : i32
    %c0_i32_1 = arith.constant 0 : i32
    return %c0_i32, %c0_i32_0 : i32, i32
  }
}

</mosaic_0001>

<llo_original>
// kernel: tpu_custom_call.1
$region0: #{tpu_custom_call.1}
  #allocation0 [shape = 'u32[]', space=smem, size = 0x4, offset = 0x4, fixed_abs, tag = 'smem constant byte address 0x4 - core index']
  #allocation1 [shape = 'u32[144,128]{1,0:T(1,128)}', space=vmem, size = 0x12000, scoped, tag = 'internal scratch']
  #allocation2 [shape = 'f32[8,768]{1,0:T(8,128)}', space=vmem, size = 0x6000, scoped, tag = 'scratch operand']
  #allocation3 [shape = 'f32[72,640]{1,0:T(8,128)}', space=vmem, size = 0x2d000, scoped, tag = 'scratch operand']
  %s0 = inlined_call_operand.hbm [shape: f32[145,640], index: 0, kind: input, shape index: {}]
  %s1 = inlined_call_operand.hbm [shape: f32[24,145], index: 1, kind: input, shape index: {}]
  %s2 = inlined_call_operand.hbm [shape: f32[8,72], index: 2, kind: input, shape index: {}]
  %s3 = inlined_call_operand.hbm [shape: f32[8,640], index: 3, kind: output, shape index: {}]
  %s4 = sld [smem:[#allocation0]]
  $region34: #{tpu_custom_call.1} parent=0
    _
  %s6 = ssub.s32 1, %s4
  %s7 = scalar_select 0, %s6, %s4
  $region1: #{tpu_custom_call.1} parent=0
    #allocation4 [shape = 'u8[389120]{0}', space=vmem, size = 0x5f000, scoped, tag = 'input window, operand 0, single buffered']
    #allocation5 [shape = 's32[1]{0}', space=sflag, size = 0x4, scoped, tag = 'scoped memory for tpu_custom_call.1']
    #allocation6 [shape = 's32[1]{0}', space=sflag, size = 0x4, scoped, tag = 'scoped memory for tpu_custom_call.1']
    #allocation7 [shape = 'u8[24576]{0}', space=vmem, size = 0x6000, scoped, tag = 'input window, operand 1, single buffered']
    #allocation8 [shape = 's32[1]{0}', space=sflag, size = 0x4, scoped, tag = 'scoped memory for tpu_custom_call.1']
    #allocation9 [shape = 'u8[4096]{0}', space=vmem, size = 0x1000, scoped, tag = 'input window, operand 2, single buffered']
    #allocation10 [shape = 'u8[20480]{0}', space=vmem, size = 0x5000, scoped, tag = 'output window, operand 0, single buffered']
    %8 = vsyncpa [#allocation5], 0
    %9 = vsyncpa [#allocation8], 0
    %10 = vsyncpa [#allocation6], 0
    // Predicated region
    $region2: #{tpu_custom_call.1} parent=1 // pred_check
      _
    $region3: #{tpu_custom_call.1} parent=1 // pred_check_branch
      %12 = sbr.rel (0) target = $region5
    $region4: #{tpu_custom_call.1} parent=1 // pred_region
      %s14 = ssub.s32 12160, 12160
      %15 = vsyncadd [#allocation5], %s14
      %s16 = sshll.u32 [#allocation4], 4
      %s17 = int_to_ptr.vmem [resolvable:$true] %s16
      %22 = dma.hbm_to_vmem [thread:$0]  %s0, 12160, %s17, [#allocation5], 640, 640, 40
    $region5: #{tpu_custom_call.1} parent=1 // pred_fallthru
      _
    // Predicated region
    $region6: #{tpu_custom_call.1} parent=1 // pred_check
      _
    $region7: #{tpu_custom_call.1} parent=1 // pred_check_branch
      %24 = sbr.rel (0) target = $region9
    $region8: #{tpu_custom_call.1} parent=1 // pred_region
      %s26 = ssub.s32 768, 768
      %27 = vsyncadd [#allocation8], %s26
      %s28 = sshll.u32 [#allocation7], 4
      %s29 = int_to_ptr.vmem [resolvable:$true] %s28
      %34 = dma.hbm_to_vmem [thread:$0]  %s1, 768, %s29, [#allocation8], 256, 256, 16
    $region9: #{tpu_custom_call.1} parent=1 // pred_fallthru
      _
    // Predicated region
    $region10: #{tpu_custom_call.1} parent=1 // pred_check
      _
    $region11: #{tpu_custom_call.1} parent=1 // pred_check_branch
      %36 = sbr.rel (0) target = $region13
    $region12: #{tpu_custom_call.1} parent=1 // pred_region
      %s38 = ssub.s32 128, 128
      %39 = vsyncadd [#allocation8], %s38
      %s41 = sshll.u32 [#allocation9], 4
      %s42 = int_to_ptr.vmem [resolvable:$true] %s41
      %44 = dma.hbm_to_vmem [thread:$0]  %s2, 128, %s42, [#allocation8]
    $region13: #{tpu_custom_call.1} parent=1 // pred_fallthru
      _
    // Predicated region
    $region14: #{tpu_custom_call.1} parent=1 // pred_check
      _
    $region15: #{tpu_custom_call.1} parent=1 // pred_check_branch
      %46 = sbr.rel (0) target = $region17
    $region16: #{tpu_custom_call.1} parent=1 // pred_region
      %47 = dma.done [#allocation5], 12160
    $region17: #{tpu_custom_call.1} parent=1 // pred_fallthru
      _
    // Predicated region
    $region18: #{tpu_custom_call.1} parent=1 // pred_check
      _
    $region19: #{tpu_custom_call.1} parent=1 // pred_check_branch
      %49 = sbr.rel (0) target = $region21
    $region20: #{tpu_custom_call.1} parent=1 // pred_region
      %50 = dma.done [#allocation8], 768
    $region21: #{tpu_custom_call.1} parent=1 // pred_fallthru
      _
    // Predicated region
    $region22: #{tpu_custom_call.1} parent=1 // pred_check
      _
    $region23: #{tpu_custom_call.1} parent=1 // pred_check_branch
      %52 = sbr.rel (0) target = $region25
    $region24: #{tpu_custom_call.1} parent=1 // pred_region
      %53 = dma.done [#allocation8], 128
    $region25: #{tpu_custom_call.1} parent=1 // pred_fallthru
      _
    %v54 = vld [vmem:[#allocation7] sm:$0xff]
    %v55 = vld [vmem:[#allocation7 + $0x8] sm:$0xff]
    %v56 = vld [vmem:[#allocation7 + $0x10] sm:$0xff]
    %v57 = vld [vmem:[#allocation7 + $0x18] sm:$0xff]
    %v58 = vld [vmem:[#allocation7 + $0x20] sm:$0xff]
    %v59 = vld [vmem:[#allocation7 + $0x28] sm:$0xff]
    %v60 = vld [vmem:[#allocation4] sm:$0xff]
    %v61 = vld [vmem:[#allocation4 + $0x8] sm:$0xff]
    %v62 = vld [vmem:[#allocation4 + $0x10] sm:$0xff]
    %v63 = vld [vmem:[#allocation4 + $0x18] sm:$0xff]
    %v64 = vld [vmem:[#allocation4 + $0x20] sm:$0xff]
    %v65 = vld [vmem:[#allocation4 + $0x28] sm:$0xff]
    %v66 = vld [vmem:[#allocation4 + $0x30] sm:$0xff]
    %v67 = vld [vmem:[#allocation4 + $0x38] sm:$0xff]
    %v68 = vld [vmem:[#allocation4 + $0x40] sm:$0xff]
    %v69 = vld [vmem:[#allocation4 + $0x48] sm:$0xff]
    %v70 = vld [vmem:[#allocation4 + $0x50] sm:$0xff]
    %v71 = vld [vmem:[#allocation4 + $0x58] sm:$0xff]
    %v72 = vld [vmem:[#allocation4 + $0x60] sm:$0xff]
    %v73 = vld [vmem:[#allocation4 + $0x68] sm:$0xff]
    %v74 = vld [vmem:[#allocation4 + $0x70] sm:$0xff]
    %v75 = vld [vmem:[#allocation4 + $0x78] sm:$0xff]
    %v76 = vld [vmem:[#allocation4 + $0x80] sm:$0xff]
    %v77 = vld [vmem:[#allocation4 + $0x88] sm:$0xff]
    %v78 = vld [vmem:[#allocation4 + $0x90] sm:$0xff]
    %v79 = vld [vmem:[#allocation4 + $0x98] sm:$0xff]
    %v80 = vld [vmem:[#allocation4 + $0xa0] sm:$0xff]
    %v81 = vld [vmem:[#allocation4 + $0xa8] sm:$0xff]
    %v82 = vld [vmem:[#allocation4 + $0xb0] sm:$0xff]
    %v83 = vld [vmem:[#allocation4 + $0xb8] sm:$0xff]
    %v84 = vld [vmem:[#allocation4 + $0xc0] sm:$0xff]
    %v85 = vld [vmem:[#allocation4 + $0xc8] sm:$0xff]
    %v86 = vld [vmem:[#allocation4 + $0xd0] sm:$0xff]
    %v87 = vld [vmem:[#allocation4 + $0xd8] sm:$0xff]
    %v88 = vld [vmem:[#allocation4 + $0xe0] sm:$0xff]
    %v89 = vld [vmem:[#allocation4 + $0xe8] sm:$0xff]
    %v90 = vld [vmem:[#allocation4 + $0xf0] sm:$0xff]
    %v91 = vld [vmem:[#allocation4 + $0xf8] sm:$0xff]
    %v92 = vld [vmem:[#allocation4 + $0x100] sm:$0xff]
    %v93 = vld [vmem:[#allocation4 + $0x108] sm:$0xff]
    %v94 = vld [vmem:[#allocation4 + $0x110] sm:$0xff]
    %v95 = vld [vmem:[#allocation4 + $0x118] sm:$0xff]
    %v96 = vld [vmem:[#allocation4 + $0x120] sm:$0xff]
    %v97 = vld [vmem:[#allocation4 + $0x128] sm:$0xff]
    %v98 = vld [vmem:[#allocation4 + $0x130] sm:$0xff]
    %v99 = vld [vmem:[#allocation4 + $0x138] sm:$0xff]
    %v100 = vld [vmem:[#allocation4 + $0x140] sm:$0xff]
    %v101 = vld [vmem:[#allocation4 + $0x148] sm:$0xff]
    %v102 = vld [vmem:[#allocation4 + $0x150] sm:$0xff]
    %v103 = vld [vmem:[#allocation4 + $0x158] sm:$0xff]
    %v104 = vld [vmem:[#allocation4 + $0x160] sm:$0xff]
    %v105 = vld [vmem:[#allocation4 + $0x168] sm:$0xff]
    %v106 = vld [vmem:[#allocation4 + $0x170] sm:$0xff]
    %v107 = vld [vmem:[#allocation4 + $0x178] sm:$0xff]
    %v108 = vld [vmem:[#allocation4 + $0x180] sm:$0xff]
    %v109 = vld [vmem:[#allocation4 + $0x188] sm:$0xff]
    %v110 = vld [vmem:[#allocation4 + $0x190] sm:$0xff]
    %v111 = vld [vmem:[#allocation4 + $0x198] sm:$0xff]
    %v112 = vld [vmem:[#allocation4 + $0x1a0] sm:$0xff]
    %v113 = vld [vmem:[#allocation4 + $0x1a8] sm:$0xff]
    %v114 = vld [vmem:[#allocation4 + $0x1b0] sm:$0xff]
    %v115 = vld [vmem:[#allocation4 + $0x1b8] sm:$0xff]
    %v116 = vld [vmem:[#allocation4 + $0x1c0] sm:$0xff]
    %v117 = vld [vmem:[#allocation4 + $0x1c8] sm:$0xff]
    %v118 = vld [vmem:[#allocation4 + $0x1d0] sm:$0xff]
    %v119 = vld [vmem:[#allocation4 + $0x1d8] sm:$0xff]
    %v120 = vld [vmem:[#allocation4 + $0x1e0] sm:$0xff]
    %v121 = vld [vmem:[#allocation4 + $0x1e8] sm:$0xff]
    %v122 = vld [vmem:[#allocation4 + $0x1f0] sm:$0xff]
    %v123 = vld [vmem:[#allocation4 + $0x1f8] sm:$0xff]
    %v124 = vld [vmem:[#allocation4 + $0x200] sm:$0xff]
    %v125 = vld [vmem:[#allocation4 + $0x208] sm:$0xff]
    %v126 = vld [vmem:[#allocation4 + $0x210] sm:$0xff]
    %v127 = vld [vmem:[#allocation4 + $0x218] sm:$0xff]
    %v128 = vld [vmem:[#allocation4 + $0x220] sm:$0xff]
    %v129 = vld [vmem:[#allocation4 + $0x228] sm:$0xff]
    %v130 = vld [vmem:[#allocation4 + $0x230] sm:$0xff]
    %v131 = vld [vmem:[#allocation4 + $0x238] sm:$0xff]
    %v132 = vld [vmem:[#allocation4 + $0x240] sm:$0xff]
    %v133 = vld [vmem:[#allocation4 + $0x248] sm:$0xff]
    %v134 = vld [vmem:[#allocation4 + $0x250] sm:$0xff]
    %v135 = vld [vmem:[#allocation4 + $0x258] sm:$0xff]
    %v136 = vld [vmem:[#allocation4 + $0x260] sm:$0xff]
    %v137 = vld [vmem:[#allocation4 + $0x268] sm:$0xff]
    %v138 = vld [vmem:[#allocation4 + $0x270] sm:$0xff]
    %v139 = vld [vmem:[#allocation4 + $0x278] sm:$0xff]
    %v140 = vld [vmem:[#allocation4 + $0x280] sm:$0xff]
    %v141 = vld [vmem:[#allocation4 + $0x288] sm:$0xff]
    %v142 = vld [vmem:[#allocation4 + $0x290] sm:$0xff]
    %v143 = vld [vmem:[#allocation4 + $0x298] sm:$0xff]
    %v144 = vld [vmem:[#allocation4 + $0x2a0] sm:$0xff]
    %v145 = vld [vmem:[#allocation4 + $0x2a8] sm:$0xff]
    %v146 = vld [vmem:[#allocation4 + $0x2b0] sm:$0xff]
    %v147 = vld [vmem:[#allocation4 + $0x2b8] sm:$0xff]
    %v148 = vld [vmem:[#allocation4 + $0x2c0] sm:$0xff]
    %v149 = vld [vmem:[#allocation4 + $0x2c8] sm:$0xff]
    %v150 = vld [vmem:[#allocation4 + $0x2d0] sm:$0x1]
    %v151 = vld [vmem:[#allocation4 + $0x2d8] sm:$0x1]
    %v152 = vld [vmem:[#allocation4 + $0x2e0] sm:$0x1]
    %v153 = vld [vmem:[#allocation4 + $0x2e8] sm:$0x1]
    %v154 = vld [vmem:[#allocation4 + $0x2f0] sm:$0x1]
    %vm155 = vcmask 138240
    %v157 = vsel %vm155, %v55, 0
    %v160 = vsel %vm155, %v57, 0
    %v163 = vsel %vm155, %v59, 0
    %vm165 = vcmask 1040384
    %v167 = vsel %vm165, %v150, 0
    %v170 = vsel %vm165, %v151, 0
    %v173 = vsel %vm165, %v152, 0
    %v176 = vsel %vm165, %v153, 0
    %v179 = vsel %vm165, %v154, 0
    %181 = vmatprep.subr.mxu0 %v136
    %182 = vmatpush1.msra.mxu0 %v135
    %183 = vmatprep.subr.mxu0 %v131
    %184 = vmatpush1.msra.mxu0 %v130
    %185 = vmatprep.subr.mxu0 %v126
    %186 = vmatpush1.msra.mxu0 %v125
    %187 = vmatprep.subr.mxu0 %v121
    %188 = vmatpush1.msra.mxu0 %v120
    %189 = vmatprep.subr.mxu0 %v116
    %190 = vmatpush1.msra.mxu0 %v115
    %191 = vmatprep.subr.mxu0 %v111
    %192 = vmatpush1.msra.mxu0 %v110
    %193 = vmatprep.subr.mxu0 %v106
    %194 = vmatpush1.msra.mxu0 %v105
    %195 = vmatprep.subr.mxu0 %v101
    %196 = vmatpush1.msra.mxu0 %v100
    %197 = vmatprep.subr.mxu0 %v96
    %198 = vmatpush1.msra.mxu0 %v95
    %199 = vmatprep.subr.mxu0 %v91
    %200 = vmatpush1.msra.mxu0 %v90
    %201 = vmatprep.subr.mxu0 %v86
    %202 = vmatpush1.msra.mxu0 %v85
    %203 = vmatprep.subr.mxu0 %v81
    %204 = vmatpush1.msra.mxu0 %v80
    %205 = vmatprep.subr.mxu0 %v76
    %206 = vmatpush1.msra.mxu0 %v75
    %207 = vmatprep.subr.mxu0 %v71
    %208 = vmatpush1.msra.mxu0 %v70
    %209 = vmatprep.subr.mxu0 %v66
    %210 = vmatpush1.msra.mxu0 %v65
    %211 = vmatprep.subr.mxu0 %v61
    %212 = vmatpush1.msra.mxu0 %v60
    %213 = vmatprep.subr.mxu0 0.0
    %214 = vmatpush2.msra.mxu0 0.0
    %215 = vmatprep.subr.mxu0 0.0
    %216 = vmatpush2.msra.mxu0 0.0
    %217 = vmatprep.subr.mxu0 0.0
    %218 = vmatpush2.msra.mxu0 0.0
    %219 = vmatprep.subr.mxu0 0.0
    %220 = vmatpush2.msra.mxu0 0.0
    %221 = vmatprep.subr.mxu0 0.0
    %222 = vmatpush2.msra.mxu0 0.0
    %223 = vmatprep.subr.mxu0 0.0
    %224 = vmatpush2.msra.mxu0 0.0
    %225 = vmatprep.subr.mxu0 0.0
    %226 = vmatpush2.msra.mxu0 0.0
    %227 = vmatprep.subr.mxu0 0.0
    %228 = vmatpush2.msra.mxu0 0.0
    %229 = vmatprep.subr.mxu0 0.0
    %230 = vmatpush2.msra.mxu0 0.0
    %231 = vmatprep.subr.mxu0 0.0
    %232 = vmatpush2.msra.mxu0 0.0
    %233 = vmatprep.subr.mxu0 0.0
    %234 = vmatpush2.msra.mxu0 0.0
    %235 = vmatprep.subr.mxu0 0.0
    %236 = vmatpush2.msra.mxu0 0.0
    %237 = vmatprep.subr.mxu0 0.0
    %238 = vmatpush2.msra.mxu0 0.0
    %239 = vmatprep.subr.mxu0 %v170
    %240 = vmatpush2.msra.mxu0 %v167
    %241 = vmatprep.subr.mxu0 %v146
    %242 = vmatpush2.msra.mxu0 %v145
    %243 = vmatprep.subr.mxu0 %v141
    %244 = vmatpush2.msra.mxu0 %v140
    %245 = vmatprep.mubr.f32.mxu0 %v157
    %246 = vmatmul.mubr.f32.gmra.mxu0 %v54
    %v247 = vpop.f32.mrf.mxu0
    %v248 = vadd.f32 0.0, %v247
    %v249 = vpop.f32.mrf.mxu0
    %v250 = vadd.f32 0.0, %v249
    %251 = vmatprep.mubr.f32.mxu0 %v160
    %252 = vmatmul.mubr.f32.gmra.mxu0 %v56
    %v253 = vpop.f32.mrf.mxu0
    %v254 = vadd.f32 0.0, %v253
    %v255 = vpop.f32.mrf.mxu0
    %v256 = vadd.f32 0.0, %v255
    %257 = vmatprep.mubr.f32.mxu0 %v163
    %258 = vmatmul.mubr.f32.gmra.mxu0 %v58
    %v259 = vpop.f32.mrf.mxu0
    %v260 = vadd.f32 0.0, %v259
    %v261 = vpop.f32.mrf.mxu0
    %v262 = vadd.f32 0.0, %v261
    %263 = vdwg.mxu0
    %264 = vmatprep.subr.mxu0 %v138
    %265 = vmatpush1.msra.mxu0 %v137
    %266 = vmatprep.subr.mxu0 %v133
    %267 = vmatpush1.msra.mxu0 %v132
    %268 = vmatprep.subr.mxu0 %v128
    %269 = vmatpush1.msra.mxu0 %v127
    %270 = vmatprep.subr.mxu0 %v123
    %271 = vmatpush1.msra.mxu0 %v122
    %272 = vmatprep.subr.mxu0 %v118
    %273 = vmatpush1.msra.mxu0 %v117
    %274 = vmatprep.subr.mxu0 %v113
    %275 = vmatpush1.msra.mxu0 %v112
    %276 = vmatprep.subr.mxu0 %v108
    %277 = vmatpush1.msra.mxu0 %v107
    %278 = vmatprep.subr.mxu0 %v103
    %279 = vmatpush1.msra.mxu0 %v102
    %280 = vmatprep.subr.mxu0 %v98
    %281 = vmatpush1.msra.mxu0 %v97
    %282 = vmatprep.subr.mxu0 %v93
    %283 = vmatpush1.msra.mxu0 %v92
    %284 = vmatprep.subr.mxu0 %v88
    %285 = vmatpush1.msra.mxu0 %v87
    %286 = vmatprep.subr.mxu0 %v83
    %287 = vmatpush1.msra.mxu0 %v82
    %288 = vmatprep.subr.mxu0 %v78
    %289 = vmatpush1.msra.mxu0 %v77
    %290 = vmatprep.subr.mxu0 %v73
    %291 = vmatpush1.msra.mxu0 %v72
    %292 = vmatprep.subr.mxu0 %v68
    %293 = vmatpush1.msra.mxu0 %v67
    %294 = vmatprep.subr.mxu0 %v63
    %295 = vmatpush1.msra.mxu0 %v62
    %296 = vmatprep.subr.mxu0 0.0
    %297 = vmatpush2.msra.mxu0 0.0
    %298 = vmatprep.subr.mxu0 0.0
    %299 = vmatpush2.msra.mxu0 0.0
    %300 = vmatprep.subr.mxu0 0.0
    %301 = vmatpush2.msra.mxu0 0.0
    %302 = vmatprep.subr.mxu0 0.0
    %303 = vmatpush2.msra.mxu0 0.0
    %304 = vmatprep.subr.mxu0 0.0
    %305 = vmatpush2.msra.mxu0 0.0
    %306 = vmatprep.subr.mxu0 0.0
    %307 = vmatpush2.msra.mxu0 0.0
    %308 = vmatprep.subr.mxu0 0.0
    %309 = vmatpush2.msra.mxu0 0.0
    %310 = vmatprep.subr.mxu0 0.0
    %311 = vmatpush2.msra.mxu0 0.0
    %312 = vmatprep.subr.mxu0 0.0
    %313 = vmatpush2.msra.mxu0 0.0
    %314 = vmatprep.subr.mxu0 0.0
    %315 = vmatpush2.msra.mxu0 0.0
    %316 = vmatprep.subr.mxu0 0.0
    %317 = vmatpush2.msra.mxu0 0.0
    %318 = vmatprep.subr.mxu0 0.0
    %319 = vmatpush2.msra.mxu0 0.0
    %320 = vmatprep.subr.mxu0 0.0
    %321 = vmatpush2.msra.mxu0 0.0
    %322 = vmatprep.subr.mxu0 %v176
    %323 = vmatpush2.msra.mxu0 %v173
    %324 = vmatprep.subr.mxu0 %v148
    %325 = vmatpush2.msra.mxu0 %v147
    %326 = vmatprep.subr.mxu0 %v143
    %327 = vmatpush2.msra.mxu0 %v142
    %328 = vmatprep.mubr.f32.mxu0 %v157
    %329 = vmatmul.mubr.f32.gmra.mxu0 %v54
    %v330 = vpop.f32.mrf.mxu0
    %v331 = vadd.f32 0.0, %v330
    %v332 = vpop.f32.mrf.mxu0
    %v333 = vadd.f32 0.0, %v332
    %334 = vmatprep.mubr.f32.mxu0 %v160
    %335 = vmatmul.mubr.f32.gmra.mxu0 %v56
    %v336 = vpop.f32.mrf.mxu0
    %v337 = vadd.f32 0.0, %v336
    %v338 = vpop.f32.mrf.mxu0
    %v339 = vadd.f32 0.0, %v338
    %340 = vmatprep.mubr.f32.mxu0 %v163
    %341 = vmatmul.mubr.f32.gmra.mxu0 %v58
    %v342 = vpop.f32.mrf.mxu0
    %v343 = vadd.f32 0.0, %v342
    %v344 = vpop.f32.mrf.mxu0
    %v345 = vadd.f32 0.0, %v344
    %346 = vdwg.mxu0
    %347 = vmatprep.subr.mxu0 0.0
    %348 = vmatpush1.msra.mxu0 %v139
    %349 = vmatprep.subr.mxu0 0.0
    %350 = vmatpush1.msra.mxu0 %v134
    %351 = vmatprep.subr.mxu0 0.0
    %352 = vmatpush1.msra.mxu0 %v129
    %353 = vmatprep.subr.mxu0 0.0
    %354 = vmatpush1.msra.mxu0 %v124
    %355 = vmatprep.subr.mxu0 0.0
    %356 = vmatpush1.msra.mxu0 %v119
    %357 = vmatprep.subr.mxu0 0.0
    %358 = vmatpush1.msra.mxu0 %v114
    %359 = vmatprep.subr.mxu0 0.0
    %360 = vmatpush1.msra.mxu0 %v109
    %361 = vmatprep.subr.mxu0 0.0
    %362 = vmatpush1.msra.mxu0 %v104
    %363 = vmatprep.subr.mxu0 0.0
    %364 = vmatpush1.msra.mxu0 %v99
    %365 = vmatprep.subr.mxu0 0.0
    %366 = vmatpush1.msra.mxu0 %v94
    %367 = vmatprep.subr.mxu0 0.0
    %368 = vmatpush1.msra.mxu0 %v89
    %369 = vmatprep.subr.mxu0 0.0
    %370 = vmatpush1.msra.mxu0 %v84
    %371 = vmatprep.subr.mxu0 0.0
    %372 = vmatpush1.msra.mxu0 %v79
    %373 = vmatprep.subr.mxu0 0.0
    %374 = vmatpush1.msra.mxu0 %v74
    %375 = vmatprep.subr.mxu0 0.0
    %376 = vmatpush1.msra.mxu0 %v69
    %377 = vmatprep.subr.mxu0 0.0
    %378 = vmatpush1.msra.mxu0 %v64
    %379 = vmatprep.subr.mxu0 0.0
    %380 = vmatpush2.msra.mxu0 0.0
    %381 = vmatprep.subr.mxu0 0.0
    %382 = vmatpush2.msra.mxu0 0.0
    %383 = vmatprep.subr.mxu0 0.0
    %384 = vmatpush2.msra.mxu0 0.0
    %385 = vmatprep.subr.mxu0 0.0
    %386 = vmatpush2.msra.mxu0 0.0
    %387 = vmatprep.subr.mxu0 0.0
    %388 = vmatpush2.msra.mxu0 0.0
    %389 = vmatprep.subr.mxu0 0.0
    %390 = vmatpush2.msra.mxu0 0.0
    %391 = vmatprep.subr.mxu0 0.0
    %392 = vmatpush2.msra.mxu0 0.0
    %393 = vmatprep.subr.mxu0 0.0
    %394 = vmatpush2.msra.mxu0 0.0
    %395 = vmatprep.subr.mxu0 0.0
    %396 = vmatpush2.msra.mxu0 0.0
    %397 = vmatprep.subr.mxu0 0.0
    %398 = vmatpush2.msra.mxu0 0.0
    %399 = vmatprep.subr.mxu0 0.0
    %400 = vmatpush2.msra.mxu0 0.0
    %401 = vmatprep.subr.mxu0 0.0
    %402 = vmatpush2.msra.mxu0 0.0
    %403 = vmatprep.subr.mxu0 0.0
    %404 = vmatpush2.msra.mxu0 0.0
    %405 = vmatprep.subr.mxu0 0.0
    %406 = vmatpush2.msra.mxu0 %v179
    %407 = vmatprep.subr.mxu0 0.0
    %408 = vmatpush2.msra.mxu0 %v149
    %409 = vmatprep.subr.mxu0 0.0
    %410 = vmatpush2.msra.mxu0 %v144
    %411 = vmatprep.mubr.f32.mxu0 %v157
    %412 = vmatmul.mubr.f32.gmra.mxu0 %v54
    %v413 = vpop.f32.mrf.mxu0
    %v414 = vadd.f32 0.0, %v413
    %v415 = vpop.f32.mrf.mxu0
    %416 = vmatprep.mubr.f32.mxu0 %v160
    %417 = vmatmul.mubr.f32.gmra.mxu0 %v56
    %v418 = vpop.f32.mrf.mxu0
    %v419 = vadd.f32 0.0, %v418
    %v420 = vpop.f32.mrf.mxu0
    %421 = vmatprep.mubr.f32.mxu0 %v163
    %422 = vmatmul.mubr.f32.gmra.mxu0 %v58
    %v423 = vpop.f32.mrf.mxu0
    %v424 = vadd.f32 0.0, %v423
    %v425 = vpop.f32.mrf.mxu0
    %426 = vdwg.mxu0
    %v427 = vxor.u32 %v248, 2147483648
    %v428 = vxor.u32 %v250, 2147483648
    %v429 = vxor.u32 %v331, 2147483648
    %v430 = vxor.u32 %v333, 2147483648
    %v431 = vxor.u32 %v414, 2147483648
    %v432 = vmul.f32 %v427, 1.442695
    %v433 = vpow.pop %v432
    %v434 = vmul.f32 %v428, 1.442695
    %v435 = vpow.pop %v434
    %v436 = vmul.f32 %v429, 1.442695
    %v437 = vpow.pop %v436
    %v438 = vmul.f32 %v430, 1.442695
    %v439 = vpow.pop %v438
    %v440 = vmul.f32 %v431, 1.442695
    %v441 = vpow.pop %v440
    %v442 = vadd.f32 %v433, 1.0
    %v443 = vadd.f32 %v435, 1.0
    %v444 = vadd.f32 %v437, 1.0
    %v445 = vadd.f32 %v439, 1.0
    %v446 = vadd.f32 %v441, 1.0
    %v447 = vrcp.pop %v442
    %v448 = vmul.f32 1.0, %v447
    %v449 = vrcp.pop %v443
    %v450 = vmul.f32 1.0, %v449
    %v451 = vrcp.pop %v444
    %v452 = vmul.f32 1.0, %v451
    %v453 = vrcp.pop %v445
    %v454 = vmul.f32 1.0, %v453
    %v455 = vrcp.pop %v446
    %v456 = vmul.f32 1.0, %v455
    %v457 = vxor.u32 %v254, 2147483648
    %v458 = vxor.u32 %v256, 2147483648
    %v459 = vxor.u32 %v337, 2147483648
    %v460 = vxor.u32 %v339, 2147483648
    %v461 = vxor.u32 %v419, 2147483648
    %v462 = vmul.f32 %v457, 1.442695
    %v463 = vpow.pop %v462
    %v464 = vmul.f32 %v458, 1.442695
    %v465 = vpow.pop %v464
    %v466 = vmul.f32 %v459, 1.442695
    %v467 = vpow.pop %v466
    %v468 = vmul.f32 %v460, 1.442695
    %v469 = vpow.pop %v468
    %v470 = vmul.f32 %v461, 1.442695
    %v471 = vpow.pop %v470
    %v472 = vadd.f32 %v463, 1.0
    %v473 = vadd.f32 %v465, 1.0
    %v474 = vadd.f32 %v467, 1.0
    %v475 = vadd.f32 %v469, 1.0
    %v476 = vadd.f32 %v471, 1.0
    %v477 = vrcp.pop %v472
    %v478 = vmul.f32 1.0, %v477
    %v479 = vrcp.pop %v473
    %v480 = vmul.f32 1.0, %v479
    %v481 = vrcp.pop %v474
    %v482 = vmul.f32 1.0, %v481
    %v483 = vrcp.pop %v475
    %v484 = vmul.f32 1.0, %v483
    %v485 = vrcp.pop %v476
    %v486 = vmul.f32 1.0, %v485
    %v487 = vld [vmem:[#allocation4 + $0x208] sm:$0xff]
    %v488 = vld [vmem:[#allocation4 + $0x210] sm:$0xff]
    %v489 = vld [vmem:[#allocation4 + $0x218] sm:$0xff]
    %v490 = vld [vmem:[#allocation4 + $0x220] sm:$0xff]
    %v491 = vld [vmem:[#allocation4 + $0x228] sm:$0xff]
    %v492 = vmul.f32 %v448, %v487
    %v493 = vmul.f32 %v450, %v488
    %v494 = vmul.f32 %v452, %v489
    %v495 = vmul.f32 %v454, %v490
    %v496 = vmul.f32 %v456, %v491
    %vm497 = vcmask 154624
    %498 = vst.msk [vmem:[#allocation2] sm:$0xff] %vm497, 0.0
    %vm499 = vcmask 1047704
    %500 = vst.msk [vmem:[#allocation2 + $0x28] sm:$0xff] %vm499, 0.0
    %506 = vrot.lane.b32.xlu0 %v492, 19
    %v507 = vpop.permute.xlu0 %506
    %508 = vrot.lane.b32.xlu0 %v493, 19
    %v509 = vpop.permute.xlu0 %508
    %510 = vrot.lane.b32.xlu0 %v494, 19
    %v511 = vpop.permute.xlu0 %510
    %512 = vrot.lane.b32.xlu0 %v495, 19
    %v513 = vpop.permute.xlu0 %512
    %514 = vrot.lane.b32.xlu0 %v496, 19
    %v515 = vpop.permute.xlu0 %514
    %v516 = vsel %vm497, %v507, %v509
    %v517 = vsel %vm497, %v509, %v511
    %v518 = vsel %vm497, %v511, %v513
    %v519 = vsel %vm497, %v513, %v515
    %526 = vst.msk [vmem:[#allocation2] sm:$0xff] %vm499, %v507
    %527 = vst [vmem:[#allocation2 + $0x8] sm:$0xff] %v516
    %528 = vst [vmem:[#allocation2 + $0x10] sm:$0xff] %v517
    %529 = vst [vmem:[#allocation2 + $0x18] sm:$0xff] %v518
    %530 = vst [vmem:[#allocation2 + $0x20] sm:$0xff] %v519
    %531 = vst.msk [vmem:[#allocation2 + $0x28] sm:$0xff] %vm497, %v515
    %v532 = vld [vmem:[#allocation2] sm:$0xff]
    %v533 = vld [vmem:[#allocation2 + $0x8] sm:$0xff]
    %v534 = vld [vmem:[#allocation2 + $0x10] sm:$0xff]
    %v535 = vld [vmem:[#allocation2 + $0x18] sm:$0xff]
    %v536 = vld [vmem:[#allocation2 + $0x20] sm:$0xff]
    %537 = vst [vmem:[#allocation3] sm:$0xff] %v532
    %538 = vst [vmem:[#allocation3 + $0x8] sm:$0xff] %v533
    %539 = vst [vmem:[#allocation3 + $0x10] sm:$0xff] %v534
    %540 = vst [vmem:[#allocation3 + $0x18] sm:$0xff] %v535
    %541 = vst [vmem:[#allocation3 + $0x20] sm:$0xff] %v536
    %v542 = vld [vmem:[#allocation2] sm:$0xff]
    %v543 = vld [vmem:[#allocation2 + $0x8] sm:$0xff]
    %v544 = vld [vmem:[#allocation2 + $0x10] sm:$0xff]
    %v545 = vld [vmem:[#allocation2 + $0x18] sm:$0xff]
    %v546 = vld [vmem:[#allocation2 + $0x20] sm:$0xff]
    %v547 = vld [vmem:[#allocation2 + $0x28] sm:$0xff]
    %554 = vrot.lane.b32.xlu0 %v542, 127
    %v555 = vpop.permute.xlu0 %554
    %556 = vrot.lane.b32.xlu0 %v543, 127
    %v557 = vpop.permute.xlu0 %556
    %558 = vrot.lane.b32.xlu0 %v544, 127
    %v559 = vpop.permute.xlu0 %558
    %560 = vrot.lane.b32.xlu0 %v545, 127
    %v561 = vpop.permute.xlu0 %560
    %562 = vrot.lane.b32.xlu0 %v546, 127
    %v563 = vpop.permute.xlu0 %562
    %564 = vrot.lane.b32.xlu0 %v547, 127
    %v565 = vpop.permute.xlu0 %564
    %vm566 = vcmask 1039360
    %v567 = vsel %vm566, %v555, %v557
    %v568 = vsel %vm566, %v557, %v559
    %v569 = vsel %vm566, %v559, %v561
    %v570 = vsel %vm566, %v561, %v563
    %v571 = vsel %vm566, %v563, %v565
    %577 = vst [vmem:[#allocation3 + $0x28] sm:$0xff] %v567
    %578 = vst [vmem:[#allocation3 + $0x30] sm:$0xff] %v568
    %579 = vst [vmem:[#allocation3 + $0x38] sm:$0xff] %v569
    %580 = vst [vmem:[#allocation3 + $0x40] sm:$0xff] %v570
    %581 = vst [vmem:[#allocation3 + $0x48] sm:$0xff] %v571
    %v582 = vld [vmem:[#allocation2] sm:$0xff]
    %v583 = vld [vmem:[#allocation2 + $0x8] sm:$0xff]
    %v584 = vld [vmem:[#allocation2 + $0x10] sm:$0xff]
    %v585 = vld [vmem:[#allocation2 + $0x18] sm:$0xff]
    %v586 = vld [vmem:[#allocation2 + $0x20] sm:$0xff]
    %v587 = vld [vmem:[#allocation2 + $0x28] sm:$0xff]
    %594 = vrot.lane.b32.xlu0 %v582, 126
    %v595 = vpop.permute.xlu0 %594
    %596 = vrot.lane.b32.xlu0 %v583, 126
    %v597 = vpop.permute.xlu0 %596
    %598 = vrot.lane.b32.xlu0 %v584, 126
    %v599 = vpop.permute.xlu0 %598
    %600 = vrot.lane.b32.xlu0 %v585, 126
    %v601 = vpop.permute.xlu0 %600
    %602 = vrot.lane.b32.xlu0 %v586, 126
    %v603 = vpop.permute.xlu0 %602
    %604 = vrot.lane.b32.xlu0 %v587, 126
    %v605 = vpop.permute.xlu0 %604
    %vm606 = vcmask 1031168
    %v607 = vsel %vm606, %v595, %v597
    %v608 = vsel %vm606, %v597, %v599
    %v609 = vsel %vm606, %v599, %v601
    %v610 = vsel %vm606, %v601, %v603
    %v611 = vsel %vm606, %v603, %v605
    %617 = vst [vmem:[#allocation3 + $0x50] sm:$0xff] %v607
    %618 = vst [vmem:[#allocation3 + $0x58] sm:$0xff] %v608
    %619 = vst [vmem:[#allocation3 + $0x60] sm:$0xff] %v609
    %620 = vst [vmem:[#allocation3 + $0x68] sm:$0xff] %v610
    %621 = vst [vmem:[#allocation3 + $0x70] sm:$0xff] %v611
    %v622 = vld [vmem:[#allocation2] sm:$0xff]
    %v623 = vld [vmem:[#allocation2 + $0x8] sm:$0xff]
    %v624 = vld [vmem:[#allocation2 + $0x10] sm:$0xff]
    %v625 = vld [vmem:[#allocation2 + $0x18] sm:$0xff]
    %v626 = vld [vmem:[#allocation2 + $0x20] sm:$0xff]
    %v627 = vld [vmem:[#allocation2 + $0x28] sm:$0xff]
    %634 = vrot.lane.b32.xlu0 %v622, 110
    %v635 = vpop.permute.xlu0 %634
    %636 = vrot.lane.b32.xlu0 %v623, 110
    %v637 = vpop.permute.xlu0 %636
    %638 = vrot.lane.b32.xlu0 %v624, 110
    %v639 = vpop.permute.xlu0 %638
    %640 = vrot.lane.b32.xlu0 %v625, 110
    %v641 = vpop.permute.xlu0 %640
    %642 = vrot.lane.b32.xlu0 %v626, 110
    %v643 = vpop.permute.xlu0 %642
    %644 = vrot.lane.b32.xlu0 %v627, 110
    %v645 = vpop.permute.xlu0 %644
    %vm646 = vcmask 900096
    %v647 = vsel %vm646, %v635, %v637
    %v648 = vsel %vm646, %v637, %v639
    %v649 = vsel %vm646, %v639, %v641
    %v650 = vsel %vm646, %v641, %v643
    %v651 = vsel %vm646, %v643, %v645
    %657 = vst [vmem:[#allocation3 + $0x78] sm:$0xff] %v647
    %658 = vst [vmem:[#allocation3 + $0x80] sm:$0xff] %v648
    %659 = vst [vmem:[#allocation3 + $0x88] sm:$0xff] %v649
    %660 = vst [vmem:[#allocation3 + $0x90] sm:$0xff] %v650
    %661 = vst [vmem:[#allocation3 + $0x98] sm:$0xff] %v651
    %v662 = vld [vmem:[#allocation2] sm:$0xff]
    %v663 = vld [vmem:[#allocation2 + $0x8] sm:$0xff]
    %v664 = vld [vmem:[#allocation2 + $0x10] sm:$0xff]
    %v665 = vld [vmem:[#allocation2 + $0x18] sm:$0xff]
    %v666 = vld [vmem:[#allocation2 + $0x20] sm:$0xff]
    %v667 = vld [vmem:[#allocation2 + $0x28] sm:$0xff]
    %674 = vrot.lane.b32.xlu0 %v662, 109
    %v675 = vpop.permute.xlu0 %674
    %676 = vrot.lane.b32.xlu0 %v663, 109
    %v677 = vpop.permute.xlu0 %676
    %678 = vrot.lane.b32.xlu0 %v664, 109
    %v679 = vpop.permute.xlu0 %678
    %680 = vrot.lane.b32.xlu0 %v665, 109
    %v681 = vpop.permute.xlu0 %680
    %682 = vrot.lane.b32.xlu0 %v666, 109
    %v683 = vpop.permute.xlu0 %682
    %684 = vrot.lane.b32.xlu0 %v667, 109
    %v685 = vpop.permute.xlu0 %684
    %vm686 = vcmask 891904
    %v687 = vsel %vm686, %v675, %v677
    %v688 = vsel %vm686, %v677, %v679
    %v689 = vsel %vm686, %v679, %v681
    %v690 = vsel %vm686, %v681, %v683
    %v691 = vsel %vm686, %v683, %v685
    %697 = vst [vmem:[#allocation3 + $0xa0] sm:$0xff] %v687
    %698 = vst [vmem:[#allocation3 + $0xa8] sm:$0xff] %v688
    %699 = vst [vmem:[#allocation3 + $0xb0] sm:$0xff] %v689
    %700 = vst [vmem:[#allocation3 + $0xb8] sm:$0xff] %v690
    %701 = vst [vmem:[#allocation3 + $0xc0] sm:$0xff] %v691
    %v702 = vld [vmem:[#allocation2] sm:$0xff]
    %v703 = vld [vmem:[#allocation2 + $0x8] sm:$0xff]
    %v704 = vld [vmem:[#allocation2 + $0x10] sm:$0xff]
    %v705 = vld [vmem:[#allocation2 + $0x18] sm:$0xff]
    %v706 = vld [vmem:[#allocation2 + $0x20] sm:$0xff]
    %v707 = vld [vmem:[#allocation2 + $0x28] sm:$0xff]
    %714 = vrot.lane.b32.xlu0 %v702, 108
    %v715 = vpop.permute.xlu0 %714
    %716 = vrot.lane.b32.xlu0 %v703, 108
    %v717 = vpop.permute.xlu0 %716
    %718 = vrot.lane.b32.xlu0 %v704, 108
    %v719 = vpop.permute.xlu0 %718
    %720 = vrot.lane.b32.xlu0 %v705, 108
    %v721 = vpop.permute.xlu0 %720
    %722 = vrot.lane.b32.xlu0 %v706, 108
    %v723 = vpop.permute.xlu0 %722
    %724 = vrot.lane.b32.xlu0 %v707, 108
    %v725 = vpop.permute.xlu0 %724
    %vm726 = vcmask 883712
    %v727 = vsel %vm726, %v715, %v717
    %v728 = vsel %vm726, %v717, %v719
    %v729 = vsel %vm726, %v719, %v721
    %v730 = vsel %vm726, %v721, %v723
    %v731 = vsel %vm726, %v723, %v725
    %737 = vst [vmem:[#allocation3 + $0xc8] sm:$0xff] %v727
    %738 = vst [vmem:[#allocation3 + $0xd0] sm:$0xff] %v728
    %739 = vst [vmem:[#allocation3 + $0xd8] sm:$0xff] %v729
    %740 = vst [vmem:[#allocation3 + $0xe0] sm:$0xff] %v730
    %741 = vst [vmem:[#allocation3 + $0xe8] sm:$0xff] %v731
    %v742 = vld [vmem:[#allocation2] sm:$0xff]
    %v743 = vld [vmem:[#allocation2 + $0x8] sm:$0xff]
    %v744 = vld [vmem:[#allocation2 + $0x10] sm:$0xff]
    %v745 = vld [vmem:[#allocation2 + $0x18] sm:$0xff]
    %v746 = vld [vmem:[#allocation2 + $0x20] sm:$0xff]
    %v747 = vld [vmem:[#allocation2 + $0x28] sm:$0xff]
    %754 = vrot.lane.b32.xlu0 %v742, 92
    %v755 = vpop.permute.xlu0 %754
    %756 = vrot.lane.b32.xlu0 %v743, 92
    %v757 = vpop.permute.xlu0 %756
    %758 = vrot.lane.b32.xlu0 %v744, 92
    %v759 = vpop.permute.xlu0 %758
    %760 = vrot.lane.b32.xlu0 %v745, 92
    %v761 = vpop.permute.xlu0 %760
    %762 = vrot.lane.b32.xlu0 %v746, 92
    %v763 = vpop.permute.xlu0 %762
    %764 = vrot.lane.b32.xlu0 %v747, 92
    %v765 = vpop.permute.xlu0 %764
    %vm766 = vcmask 752640
    %v767 = vsel %vm766, %v755, %v757
    %v768 = vsel %vm766, %v757, %v759
    %v769 = vsel %vm766, %v759, %v761
    %v770 = vsel %vm766, %v761, %v763
    %v771 = vsel %vm766, %v763, %v765
    %777 = vst [vmem:[#allocation3 + $0xf0] sm:$0xff] %v767
    %778 = vst [vmem:[#allocation3 + $0xf8] sm:$0xff] %v768
    %779 = vst [vmem:[#allocation3 + $0x100] sm:$0xff] %v769
    %780 = vst [vmem:[#allocation3 + $0x108] sm:$0xff] %v770
    %781 = vst [vmem:[#allocation3 + $0x110] sm:$0xff] %v771
    %v782 = vld [vmem:[#allocation2] sm:$0xff]
    %v783 = vld [vmem:[#allocation2 + $0x8] sm:$0xff]
    %v784 = vld [vmem:[#allocation2 + $0x10] sm:$0xff]
    %v785 = vld [vmem:[#allocation2 + $0x18] sm:$0xff]
    %v786 = vld [vmem:[#allocation2 + $0x20] sm:$0xff]
    %v787 = vld [vmem:[#allocation2 + $0x28] sm:$0xff]
    %794 = vrot.lane.b32.xlu0 %v782, 91
    %v795 = vpop.permute.xlu0 %794
    %796 = vrot.lane.b32.xlu0 %v783, 91
    %v797 = vpop.permute.xlu0 %796
    %798 = vrot.lane.b32.xlu0 %v784, 91
    %v799 = vpop.permute.xlu0 %798
    %800 = vrot.lane.b32.xlu0 %v785, 91
    %v801 = vpop.permute.xlu0 %800
    %802 = vrot.lane.b32.xlu0 %v786, 91
    %v803 = vpop.permute.xlu0 %802
    %804 = vrot.lane.b32.xlu0 %v787, 91
    %v805 = vpop.permute.xlu0 %804
    %vm806 = vcmask 744448
    %v807 = vsel %vm806, %v795, %v797
    %v808 = vsel %vm806, %v797, %v799
    %v809 = vsel %vm806, %v799, %v801
    %v810 = vsel %vm806, %v801, %v803
    %v811 = vsel %vm806, %v803, %v805
    %817 = vst [vmem:[#allocation3 + $0x118] sm:$0xff] %v807
    %818 = vst [vmem:[#allocation3 + $0x120] sm:$0xff] %v808
    %819 = vst [vmem:[#allocation3 + $0x128] sm:$0xff] %v809
    %820 = vst [vmem:[#allocation3 + $0x130] sm:$0xff] %v810
    %821 = vst [vmem:[#allocation3 + $0x138] sm:$0xff] %v811
    %v822 = vld [vmem:[#allocation2] sm:$0xff]
    %v823 = vld [vmem:[#allocation2 + $0x8] sm:$0xff]
    %v824 = vld [vmem:[#allocation2 + $0x10] sm:$0xff]
    %v825 = vld [vmem:[#allocation2 + $0x18] sm:$0xff]
    %v826 = vld [vmem:[#allocation2 + $0x20] sm:$0xff]
    %v827 = vld [vmem:[#allocation2 + $0x28] sm:$0xff]
    %834 = vrot.lane.b32.xlu0 %v822, 90
    %v835 = vpop.permute.xlu0 %834
    %836 = vrot.lane.b32.xlu0 %v823, 90
    %v837 = vpop.permute.xlu0 %836
    %838 = vrot.lane.b32.xlu0 %v824, 90
    %v839 = vpop.permute.xlu0 %838
    %840 = vrot.lane.b32.xlu0 %v825, 90
    %v841 = vpop.permute.xlu0 %840
    %842 = vrot.lane.b32.xlu0 %v826, 90
    %v843 = vpop.permute.xlu0 %842
    %844 = vrot.lane.b32.xlu0 %v827, 90
    %v845 = vpop.permute.xlu0 %844
    %vm846 = vcmask 736256
    %v847 = vsel %vm846, %v835, %v837
    %v848 = vsel %vm846, %v837, %v839
    %v849 = vsel %vm846, %v839, %v841
    %v850 = vsel %vm846, %v841, %v843
    %v851 = vsel %vm846, %v843, %v845
    %857 = vst [vmem:[#allocation3 + $0x140] sm:$0xff] %v847
    %858 = vst [vmem:[#allocation3 + $0x148] sm:$0xff] %v848
    %859 = vst [vmem:[#allocation3 + $0x150] sm:$0xff] %v849
    %860 = vst [vmem:[#allocation3 + $0x158] sm:$0xff] %v850
    %861 = vst [vmem:[#allocation3 + $0x160] sm:$0xff] %v851
    %v862 = vld [vmem:[#allocation9] sm:$0xff]
    %v863 = vld [vmem:[#allocation3] sm:$0xff]
    %v864 = vld [vmem:[#allocation3 + $0x8] sm:$0xff]
    %v865 = vld [vmem:[#allocation3 + $0x10] sm:$0xff]
    %v866 = vld [vmem:[#allocation3 + $0x18] sm:$0xff]
    %v867 = vld [vmem:[#allocation3 + $0x20] sm:$0xff]
    %v868 = vld [vmem:[#allocation3 + $0x28] sm:$0xff]
    %v869 = vld [vmem:[#allocation3 + $0x30] sm:$0xff]
    %v870 = vld [vmem:[#allocation3 + $0x38] sm:$0xff]
    %v871 = vld [vmem:[#allocation3 + $0x40] sm:$0xff]
    %v872 = vld [vmem:[#allocation3 + $0x48] sm:$0xff]
    %v873 = vld [vmem:[#allocation3 + $0x50] sm:$0xff]
    %v874 = vld [vmem:[#allocation3 + $0x58] sm:$0xff]
    %v875 = vld [vmem:[#allocation3 + $0x60] sm:$0xff]
    %v876 = vld [vmem:[#allocation3 + $0x68] sm:$0xff]
    %v877 = vld [vmem:[#allocation3 + $0x70] sm:$0xff]
    %v878 = vld [vmem:[#allocation3 + $0x78] sm:$0xff]
    %v879 = vld [vmem:[#allocation3 + $0x80] sm:$0xff]
    %v880 = vld [vmem:[#allocation3 + $0x88] sm:$0xff]
    %v881 = vld [vmem:[#allocation3 + $0x90] sm:$0xff]
    %v882 = vld [vmem:[#allocation3 + $0x98] sm:$0xff]
    %v883 = vld [vmem:[#allocation3 + $0xa0] sm:$0xff]
    %v884 = vld [vmem:[#allocation3 + $0xa8] sm:$0xff]
    %v885 = vld [vmem:[#allocation3 + $0xb0] sm:$0xff]
    %v886 = vld [vmem:[#allocation3 + $0xb8] sm:$0xff]
    %v887 = vld [vmem:[#allocation3 + $0xc0] sm:$0xff]
    %v888 = vld [vmem:[#allocation3 + $0xc8] sm:$0xff]
    %v889 = vld [vmem:[#allocation3 + $0xd0] sm:$0xff]
    %v890 = vld [vmem:[#allocation3 + $0xd8] sm:$0xff]
    %v891 = vld [vmem:[#allocation3 + $0xe0] sm:$0xff]
    %v892 = vld [vmem:[#allocation3 + $0xe8] sm:$0xff]
    %v893 = vld [vmem:[#allocation3 + $0xf0] sm:$0xff]
    %v894 = vld [vmem:[#allocation3 + $0xf8] sm:$0xff]
    %v895 = vld [vmem:[#allocation3 + $0x100] sm:$0xff]
    %v896 = vld [vmem:[#allocation3 + $0x108] sm:$0xff]
    %v897 = vld [vmem:[#allocation3 + $0x110] sm:$0xff]
    %v898 = vld [vmem:[#allocation3 + $0x118] sm:$0xff]
    %v899 = vld [vmem:[#allocation3 + $0x120] sm:$0xff]
    %v900 = vld [vmem:[#allocation3 + $0x128] sm:$0xff]
    %v901 = vld [vmem:[#allocation3 + $0x130] sm:$0xff]
    %v902 = vld [vmem:[#allocation3 + $0x138] sm:$0xff]
    %v903 = vld [vmem:[#allocation3 + $0x140] sm:$0xff]
    %v904 = vld [vmem:[#allocation3 + $0x148] sm:$0xff]
    %v905 = vld [vmem:[#allocation3 + $0x150] sm:$0xff]
    %v906 = vld [vmem:[#allocation3 + $0x158] sm:$0xff]
    %v907 = vld [vmem:[#allocation3 + $0x160] sm:$0xff]
    %vm908 = vcmask 588800
    %v910 = vsel %vm908, %v862, 0
    %912 = vmatprep.subr.mxu0 0.0
    %913 = vmatpush1.msra.mxu0 0.0
    %914 = vmatprep.subr.mxu0 0.0
    %915 = vmatpush1.msra.mxu0 0.0
    %916 = vmatprep.subr.mxu0 0.0
    %917 = vmatpush1.msra.mxu0 0.0
    %918 = vmatprep.subr.mxu0 0.0
    %919 = vmatpush1.msra.mxu0 0.0
    %920 = vmatprep.subr.mxu0 0.0
    %921 = vmatpush1.msra.mxu0 0.0
    %922 = vmatprep.subr.mxu0 0.0
    %923 = vmatpush1.msra.mxu0 0.0
    %924 = vmatprep.subr.mxu0 0.0
    %925 = vmatpush1.msra.mxu0 0.0
    %926 = vmatprep.subr.mxu0 %v904
    %927 = vmatpush1.msra.mxu0 %v903
    %928 = vmatprep.subr.mxu0 %v899
    %929 = vmatpush1.msra.mxu0 %v898
    %930 = vmatprep.subr.mxu0 %v894
    %931 = vmatpush1.msra.mxu0 %v893
    %932 = vmatprep.subr.mxu0 %v889
    %933 = vmatpush1.msra.mxu0 %v888
    %934 = vmatprep.subr.mxu0 %v884
    %935 = vmatpush1.msra.mxu0 %v883
    %936 = vmatprep.subr.mxu0 %v879
    %937 = vmatpush1.msra.mxu0 %v878
    %938 = vmatprep.subr.mxu0 %v874
    %939 = vmatpush1.msra.mxu0 %v873
    %940 = vmatprep.subr.mxu0 %v869
    %941 = vmatpush1.msra.mxu0 %v868
    %942 = vmatprep.subr.mxu0 %v864
    %943 = vmatpush1.msra.mxu0 %v863
    %944 = vmatprep.subr.mxu0 0.0
    %945 = vmatpush2.msra.mxu0 0.0
    %946 = vmatprep.subr.mxu0 0.0
    %947 = vmatpush2.msra.mxu0 0.0
    %948 = vmatprep.subr.mxu0 0.0
    %949 = vmatpush2.msra.mxu0 0.0
    %950 = vmatprep.subr.mxu0 0.0
    %951 = vmatpush2.msra.mxu0 0.0
    %952 = vmatprep.subr.mxu0 0.0
    %953 = vmatpush2.msra.mxu0 0.0
    %954 = vmatprep.subr.mxu0 0.0
    %955 = vmatpush2.msra.mxu0 0.0
    %956 = vmatprep.subr.mxu0 0.0
    %957 = vmatpush2.msra.mxu0 0.0
    %958 = vmatprep.subr.mxu0 0.0
    %959 = vmatpush2.msra.mxu0 0.0
    %960 = vmatprep.subr.mxu0 0.0
    %961 = vmatpush2.msra.mxu0 0.0
    %962 = vmatprep.subr.mxu0 0.0
    %963 = vmatpush2.msra.mxu0 0.0
    %964 = vmatprep.subr.mxu0 0.0
    %965 = vmatpush2.msra.mxu0 0.0
    %966 = vmatprep.subr.mxu0 0.0
    %967 = vmatpush2.msra.mxu0 0.0
    %968 = vmatprep.subr.mxu0 0.0
    %969 = vmatpush2.msra.mxu0 0.0
    %970 = vmatprep.subr.mxu0 0.0
    %971 = vmatpush2.msra.mxu0 0.0
    %972 = vmatprep.subr.mxu0 0.0
    %973 = vmatpush2.msra.mxu0 0.0
    %974 = vmatprep.subr.mxu0 0.0
    %975 = vmatpush2.msra.mxu0 0.0
    %976 = vmatprep.mubr.f32.mxu0 0.0
    %977 = vmatmul.mubr.f32.gmra.mxu0 %v910
    %v978 = vpop.f32.mrf.mxu0
    %v979 = vadd.f32 0.0, %v978
    %v980 = vpop.f32.mrf.mxu0
    %v981 = vadd.f32 0.0, %v980
    %982 = vdwg.mxu0
    %983 = vmatprep.subr.mxu0 0.0
    %984 = vmatpush1.msra.mxu0 0.0
    %985 = vmatprep.subr.mxu0 0.0
    %986 = vmatpush1.msra.mxu0 0.0
    %987 = vmatprep.subr.mxu0 0.0
    %988 = vmatpush1.msra.mxu0 0.0
    %989 = vmatprep.subr.mxu0 0.0
    %990 = vmatpush1.msra.mxu0 0.0
    %991 = vmatprep.subr.mxu0 0.0
    %992 = vmatpush1.msra.mxu0 0.0
    %993 = vmatprep.subr.mxu0 0.0
    %994 = vmatpush1.msra.mxu0 0.0
    %995 = vmatprep.subr.mxu0 0.0
    %996 = vmatpush1.msra.mxu0 0.0
    %997 = vmatprep.subr.mxu0 %v906
    %998 = vmatpush1.msra.mxu0 %v905
    %999 = vmatprep.subr.mxu0 %v901
    %1000 = vmatpush1.msra.mxu0 %v900
    %1001 = vmatprep.subr.mxu0 %v896
    %1002 = vmatpush1.msra.mxu0 %v895
    %1003 = vmatprep.subr.mxu0 %v891
    %1004 = vmatpush1.msra.mxu0 %v890
    %1005 = vmatprep.subr.mxu0 %v886
    %1006 = vmatpush1.msra.mxu0 %v885
    %1007 = vmatprep.subr.mxu0 %v881
    %1008 = vmatpush1.msra.mxu0 %v880
    %1009 = vmatprep.subr.mxu0 %v876
    %1010 = vmatpush1.msra.mxu0 %v875
    %1011 = vmatprep.subr.mxu0 %v871
    %1012 = vmatpush1.msra.mxu0 %v870
    %1013 = vmatprep.subr.mxu0 %v866
    %1014 = vmatpush1.msra.mxu0 %v865
    %1015 = vmatprep.subr.mxu0 0.0
    %1016 = vmatpush2.msra.mxu0 0.0
    %1017 = vmatprep.subr.mxu0 0.0
    %1018 = vmatpush2.msra.mxu0 0.0
    %1019 = vmatprep.subr.mxu0 0.0
    %1020 = vmatpush2.msra.mxu0 0.0
    %1021 = vmatprep.subr.mxu0 0.0
    %1022 = vmatpush2.msra.mxu0 0.0
    %1023 = vmatprep.subr.mxu0 0.0
    %1024 = vmatpush2.msra.mxu0 0.0
    %1025 = vmatprep.subr.mxu0 0.0
    %1026 = vmatpush2.msra.mxu0 0.0
    %1027 = vmatprep.subr.mxu0 0.0
    %1028 = vmatpush2.msra.mxu0 0.0
    %1029 = vmatprep.subr.mxu0 0.0
    %1030 = vmatpush2.msra.mxu0 0.0
    %1031 = vmatprep.subr.mxu0 0.0
    %1032 = vmatpush2.msra.mxu0 0.0
    %1033 = vmatprep.subr.mxu0 0.0
    %1034 = vmatpush2.msra.mxu0 0.0
    %1035 = vmatprep.subr.mxu0 0.0
    %1036 = vmatpush2.msra.mxu0 0.0
    %1037 = vmatprep.subr.mxu0 0.0
    %1038 = vmatpush2.msra.mxu0 0.0
    %1039 = vmatprep.subr.mxu0 0.0
    %1040 = vmatpush2.msra.mxu0 0.0
    %1041 = vmatprep.subr.mxu0 0.0
    %1042 = vmatpush2.msra.mxu0 0.0
    %1043 = vmatprep.subr.mxu0 0.0
    %1044 = vmatpush2.msra.mxu0 0.0
    %1045 = vmatprep.subr.mxu0 0.0
    %1046 = vmatpush2.msra.mxu0 0.0
    %1047 = vmatprep.mubr.f32.mxu0 0.0
    %1048 = vmatmul.mubr.f32.gmra.mxu0 %v910
    %v1049 = vpop.f32.mrf.mxu0
    %v1050 = vadd.f32 0.0, %v1049
    %v1051 = vpop.f32.mrf.mxu0
    %v1052 = vadd.f32 0.0, %v1051
    %1053 = vdwg.mxu0
    %1054 = vmatprep.subr.mxu0 0.0
    %1055 = vmatpush1.msra.mxu0 0.0
    %1056 = vmatprep.subr.mxu0 0.0
    %1057 = vmatpush1.msra.mxu0 0.0
    %1058 = vmatprep.subr.mxu0 0.0
    %1059 = vmatpush1.msra.mxu0 0.0
    %1060 = vmatprep.subr.mxu0 0.0
    %1061 = vmatpush1.msra.mxu0 0.0
    %1062 = vmatprep.subr.mxu0 0.0
    %1063 = vmatpush1.msra.mxu0 0.0
    %1064 = vmatprep.subr.mxu0 0.0
    %1065 = vmatpush1.msra.mxu0 0.0
    %1066 = vmatprep.subr.mxu0 0.0
    %1067 = vmatpush1.msra.mxu0 0.0
    %1068 = vmatprep.subr.mxu0 0.0
    %1069 = vmatpush1.msra.mxu0 %v907
    %1070 = vmatprep.subr.mxu0 0.0
    %1071 = vmatpush1.msra.mxu0 %v902
    %1072 = vmatprep.subr.mxu0 0.0
    %1073 = vmatpush1.msra.mxu0 %v897
    %1074 = vmatprep.subr.mxu0 0.0
    %1075 = vmatpush1.msra.mxu0 %v892
    %1076 = vmatprep.subr.mxu0 0.0
    %1077 = vmatpush1.msra.mxu0 %v887
    %1078 = vmatprep.subr.mxu0 0.0
    %1079 = vmatpush1.msra.mxu0 %v882
    %1080 = vmatprep.subr.mxu0 0.0
    %1081 = vmatpush1.msra.mxu0 %v877
    %1082 = vmatprep.subr.mxu0 0.0
    %1083 = vmatpush1.msra.mxu0 %v872
    %1084 = vmatprep.subr.mxu0 0.0
    %1085 = vmatpush1.msra.mxu0 %v867
    %1086 = vmatprep.subr.mxu0 0.0
    %1087 = vmatpush2.msra.mxu0 0.0
    %1088 = vmatprep.subr.mxu0 0.0
    %1089 = vmatpush2.msra.mxu0 0.0
    %1090 = vmatprep.subr.mxu0 0.0
    %1091 = vmatpush2.msra.mxu0 0.0
    %1092 = vmatprep.subr.mxu0 0.0
    %1093 = vmatpush2.msra.mxu0 0.0
    %1094 = vmatprep.subr.mxu0 0.0
    %1095 = vmatpush2.msra.mxu0 0.0
    %1096 = vmatprep.subr.mxu0 0.0
    %1097 = vmatpush2.msra.mxu0 0.0
    %1098 = vmatprep.subr.mxu0 0.0
    %1099 = vmatpush2.msra.mxu0 0.0
    %1100 = vmatprep.subr.mxu0 0.0
    %1101 = vmatpush2.msra.mxu0 0.0
    %1102 = vmatprep.subr.mxu0 0.0
    %1103 = vmatpush2.msra.mxu0 0.0
    %1104 = vmatprep.subr.mxu0 0.0
    %1105 = vmatpush2.msra.mxu0 0.0
    %1106 = vmatprep.subr.mxu0 0.0
    %1107 = vmatpush2.msra.mxu0 0.0
    %1108 = vmatprep.subr.mxu0 0.0
    %1109 = vmatpush2.msra.mxu0 0.0
    %1110 = vmatprep.subr.mxu0 0.0
    %1111 = vmatpush2.msra.mxu0 0.0
    %1112 = vmatprep.subr.mxu0 0.0
    %1113 = vmatpush2.msra.mxu0 0.0
    %1114 = vmatprep.subr.mxu0 0.0
    %1115 = vmatpush2.msra.mxu0 0.0
    %1116 = vmatprep.subr.mxu0 0.0
    %1117 = vmatpush2.msra.mxu0 0.0
    %1118 = vmatprep.mubr.f32.mxu0 0.0
    %1119 = vmatmul.mubr.f32.gmra.mxu0 %v910
    %v1120 = vpop.f32.mrf.mxu0
    %v1121 = vadd.f32 0.0, %v1120
    %v1122 = vpop.f32.mrf.mxu0
    %1123 = vdwg.mxu0
    %v1124 = vadd.f32 %v260, %v979
    %v1125 = vadd.f32 %v262, %v981
    %v1126 = vadd.f32 %v343, %v1050
    %v1127 = vadd.f32 %v345, %v1052
    %v1128 = vadd.f32 %v424, %v1121
    %v1129 = vtanh.pop %v1124
    %v1130 = vtanh.pop %v1125
    %v1131 = vtanh.pop %v1126
    %v1132 = vtanh.pop %v1127
    %v1133 = vtanh.pop %v1128
    %v1134 = vsub.f32 %v1129, %v487
    %v1135 = vsub.f32 %v1130, %v488
    %v1136 = vsub.f32 %v1131, %v489
    %v1137 = vsub.f32 %v1132, %v490
    %v1138 = vsub.f32 %v1133, %v491
    %v1139 = vmul.f32 %v478, %v1134
    %v1140 = vmul.f32 %v480, %v1135
    %v1141 = vmul.f32 %v482, %v1136
    %v1142 = vmul.f32 %v484, %v1137
    %v1143 = vmul.f32 %v486, %v1138
    %v1144 = vadd.f32 %v487, %v1139
    %v1145 = vadd.f32 %v488, %v1140
    %v1146 = vadd.f32 %v489, %v1141
    %v1147 = vadd.f32 %v490, %v1142
    %v1148 = vadd.f32 %v491, %v1143
    %1149 = vst [vmem:[#allocation10] sm:$0xff] %v1144
    %1150 = vst [vmem:[#allocation10 + $0x8] sm:$0xff] %v1145
    %1151 = vst [vmem:[#allocation10 + $0x10] sm:$0xff] %v1146
    %1152 = vst [vmem:[#allocation10 + $0x18] sm:$0xff] %v1147
    %1153 = vst [vmem:[#allocation10 + $0x20] sm:$0xff] %v1148
    // Predicated region
    $region26: #{tpu_custom_call.1} parent=1 // pred_check
      _
    $region27: #{tpu_custom_call.1} parent=1 // pred_check_branch
      %1155 = sbr.rel (0) target = $region29
    $region28: #{tpu_custom_call.1} parent=1 // pred_region
      %s1157 = ssub.s32 640, 640
      %1158 = vsyncadd [#allocation6], %s1157
      %s1160 = sshll.u32 [#allocation10], 4
      %s1161 = int_to_ptr.vmem [resolvable:$true] %s1160
      %1163 = dma.vmem_to_hbm [thread:$0]  %s1161, 640, %s3, [#allocation6]
    $region29: #{tpu_custom_call.1} parent=1 // pred_fallthru
      _
    // Predicated region
    $region30: #{tpu_custom_call.1} parent=1 // pred_check
      _
    $region31: #{tpu_custom_call.1} parent=1 // pred_check_branch
      %1165 = sbr.rel (0) target = $region33
    $region32: #{tpu_custom_call.1} parent=1 // pred_region
      %1166 = dma.done [#allocation6], 640
    $region33: #{tpu_custom_call.1} parent=1 // pred_fallthru
      _
    %1167 = vsyncpa [#allocation5], 1
    %1168 = vsyncpa [#allocation8], 1
    %1169 = vsyncpa [#allocation6], 1

</llo_original>
